<compile_context>
chip_gen: v7x
topology: tpu7x:2x2x1
jax: 0.10.0
libtpu: 0.0.40
codegen_flags: <defaults>
</compile_context>

<pallas_src>
import functools

import jax
import jax.numpy as jnp
from jax.experimental import pallas as pl
from jax.experimental.pallas import tpu as pltpu


def _topk_pool_kernel(K, TB, lengths_ref, x_ref, o_ref):
    """Processes one (TB, S, TF) block: top-K along the set axis per feature.

    lengths_ref : SMEM int32 (B,)   (scalar prefetch)
    x_ref       : VMEM (TB, S, TF)
    o_ref       : VMEM (TB, K, TF)
    """
    b0 = pl.program_id(0) * TB
    S = x_ref.shape[1]

    # (S, 1) iota: broadcasts lazily against scalars / (1, TF) rows, costing a
    # single column of vregs instead of a full (S, TF) int32 slab.
    row_ids = jax.lax.broadcasted_iota(jnp.int32, (S, 1), 0)
    neg_inf = jnp.float32(-jnp.inf)

    for i in range(TB):                                  # static & small -> unrolled
        length = lengths_ref[b0 + i]                     # scalar int32
        k_len = jnp.minimum(length, K)                   # clamp(lengths, max=k)

        # Compute in f32 (exact for pure selection; avoids bf16 VPU gaps on v5e).
        x = x_ref[i].astype(jnp.float32)                 # (S, TF)
        # apply_masks(x, lengths, fill_value=-inf)
        x = jnp.where(row_ids < length, x, neg_inf)

        # Iterative top-K along the set (sublane) axis, per feature column.
        # Each pass: column-wise max, emit it, then knock out exactly one
        # occurrence (the first index) so duplicates are each counted once.
        # TODO(synk): NaN handling differs from torch.topk (a NaN valid row is
        # never knocked out here); NaNs assumed absent from valid inputs.
        for j in range(K):                               # static & small -> unrolled
            cur_max = jnp.max(x, axis=0, keepdims=True)  # (1, TF)
            # apply_masks(out, clamped_lengths): output rows j >= k_len -> 0
            out_row = jnp.where(j < k_len, cur_max, 0.0)
            o_ref[i, j:j + 1, :] = out_row.astype(o_ref.dtype)   # direct store
            if j + 1 < K:                                # skip knockout on last pass
                is_max = x == cur_max
                first_idx = jnp.min(
                    jnp.where(is_max, row_ids, S), axis=0, keepdims=True)  # (1, TF)
                x = jnp.where(row_ids == first_idx, neg_inf, x)


def _pick_feature_tile(F):
    """Lane tile: multiple of 128 dividing F when possible, else the full dim."""
    if F % 128 == 0:
        for t in (512, 256, 128):
            if F % t == 0:
                return t
        return 128
    return F


def _pick_batch_tile(B, S, TF):
    """Batch tile: amortize per-grid-step overhead, keep the block VMEM modest."""
    tb = 1
    for t in (8, 4, 2):
        if B % t == 0:
            tb = t
            break
    # Keep the f32 working set / double-buffered block well under the scoped
    # VMEM limit (v7x: 64 MiB physical, 32 MiB scoped default).
    while tb > 1 and tb * S * TF * 4 > (2 << 20):
        tb //= 2
    return tb


def global_topk_pool1d(x, lengths, k, largest=True, dim=1):
    """Pallas equivalent of GlobalTopKPool1d.forward.

    x       : (B, S, F) float
    lengths : (B,) int
    returns : (B, k, F) values, (B,) clamped lengths
    """
    assert dim == 1, "only dim=1 (set dimension) is implemented"
    # TODO(synk): largest=False variant not implemented (module default is True).
    assert largest, "only largest=True is implemented"
    assert jnp.issubdtype(x.dtype, jnp.floating), "floating-point inputs only"

    B, S, F = x.shape
    assert k <= S, "k must not exceed the set size"
    lengths = lengths.astype(jnp.int32)

    TF = _pick_feature_tile(F)
    TB = _pick_batch_tile(B, S, TF)
    itemsize = jnp.dtype(x.dtype).itemsize

    # Read-dominant, no MXU / transcendentals: ~5 VPU/XLU passes per selected k.
    cost = pl.CostEstimate(
        flops=int(5 * k * B * S * F),
        transcendentals=0,
        bytes_accessed=int(B * S * F * itemsize + B * k * F * itemsize + B * 4),
    )

    block_bytes = (TB * S * TF + TB * k * TF) * itemsize
    vmem_limit = int(min(32 << 20, max(4 << 20, 6 * block_bytes)))

    out = pl.pallas_call(
        functools.partial(_topk_pool_kernel, k, TB),
        out_shape=jax.ShapeDtypeStruct((B, k, F), x.dtype),
        grid_spec=pltpu.PrefetchScalarGridSpec(
            num_scalar_prefetch=1,
            grid=(B // TB, F // TF),
            in_specs=[pl.BlockSpec((TB, S, TF), lambda b, f, lens: (b, 0, f))],
            out_specs=pl.BlockSpec((TB, k, TF), lambda b, f, lens: (b, 0, f)),
        ),
        compiler_params=pltpu.CompilerParams(
            dimension_semantics=("parallel", "parallel"),
            vmem_limit_bytes=vmem_limit),
        cost_estimate=cost,
    )(lengths, x)

    new_lengths = jnp.minimum(lengths, jnp.int32(k))
    return out, new_lengths


def _reference_topk_pool(x, lengths, k):
    """Pure-JAX reference matching the PyTorch semantics (descending order)."""
    B, S, F = x.shape
    ids = jnp.arange(S)[None, :, None]
    xm = jnp.where(ids < lengths[:, None, None], x.astype(jnp.float32), -jnp.inf)
    vals = jax.lax.top_k(jnp.swapaxes(xm, 1, 2), k)[0]   # (B, F, k)
    vals = jnp.swapaxes(vals, 1, 2)                      # (B, k, F)
    new_lengths = jnp.minimum(lengths.astype(jnp.int32), jnp.int32(k))
    out_ids = jnp.arange(k)[None, :, None]
    vals = jnp.where(out_ids < new_lengths[:, None, None], vals, 0.0)
    return vals.astype(x.dtype), new_lengths


if __name__ == "__main__":
    key = jax.random.PRNGKey(0)
    k1, k2 = jax.random.split(key)

    # Case 1: the module's canonical small shape (f32, F < 128 -> full-F block).
    K = 4
    B, S, F = 2, 16, 32
    x = jax.random.normal(k1, (B, S, F), dtype=jnp.float32)
    lengths = jnp.array([10, 3], dtype=jnp.int32)
    out, out_lengths = global_topk_pool1d(x, lengths, K)
    out = jax.block_until_ready(out)
    out_lengths = jax.block_until_ready(out_lengths)
    ref_out, ref_lengths = _reference_topk_pool(x, lengths, K)
    assert out.shape == (B, K, F) and out_lengths.shape == (B,)
    assert jnp.allclose(out, ref_out, atol=1e-6), "values mismatch vs reference (case 1)"
    assert jnp.array_equal(out_lengths, ref_lengths), "lengths mismatch (case 1)"

    # Case 2: exercises lane-dense feature tiling (F multiple of 128),
    # multi-batch blocks, bf16 input (f32 compute path), and edge lengths.
    K2 = 3
    B2, S2, F2 = 4, 24, 256
    x2 = jax.random.normal(k2, (B2, S2, F2), dtype=jnp.float32).astype(jnp.bfloat16)
    lengths2 = jnp.array([0, 5, 24, 2], dtype=jnp.int32)
    out2, out_lengths2 = global_topk_pool1d(x2, lengths2, K2)
    out2 = jax.block_until_ready(out2)
    out_lengths2 = jax.block_until_ready(out_lengths2)
    ref_out2, ref_lengths2 = _reference_topk_pool(x2, lengths2, K2)
    assert out2.shape == (B2, K2, F2) and out_lengths2.shape == (B2,)
    assert jnp.allclose(out2.astype(jnp.float32), ref_out2.astype(jnp.float32),
                        atol=1e-6), "values mismatch vs reference (case 2)"
    assert jnp.array_equal(out_lengths2, ref_lengths2), "lengths mismatch (case 2)"

    print("KERNEL_OK")
</pallas_src>

<mosaic_0001>
module attributes {stable_mosaic.version = 11 : i64} {
  func.func @_topk_pool_kernel(%arg0: i32, %arg1: i32, %arg2: memref<2xi32, #tpu.memory_space<smem>>, %arg3: memref<2x16x32xf32, #tpu.memory_space<vmem>>, %arg4: memref<2x4x32xf32, #tpu.memory_space<vmem>>) attributes {dimension_semantics = [#tpu.dimension_semantics<parallel>, #tpu.dimension_semantics<parallel>], iteration_bounds = array<i64: 1, 1>, scalar_prefetch = 1 : i64, scratch_operands = 0 : i64, tpu.core_type = #tpu.core_type<tc>, window_params = [{transform_indices = @transform_0, window_bounds = array<i64: 2, 16, 32>}, {transform_indices = @transform_1, window_bounds = array<i64: 2, 4, 32>}]} {
    %c2_i32 = arith.constant 2 : i32
    %0 = arith.muli %arg0, %c2_i32 : i32
    %1 = tpu.iota {dimensions = array<i32: 0>} : vector<16x1xi32>
    %c0_i32 = arith.constant 0 : i32
    %2 = arith.addi %0, %c0_i32 : i32
    %3 = arith.index_cast %2 : i32 to index
    %4 = memref.load %arg2[%3] : memref<2xi32, #tpu.memory_space<smem>>
    %c4_i32 = arith.constant 4 : i32
    %5 = arith.minsi %4, %c4_i32 : i32
    %c0 = arith.constant 0 : index
    %c0_0 = arith.constant 0 : index
    %c0_1 = arith.constant 0 : index
    %6 = vector.load %arg3[%c0, %c0_0, %c0_1] : memref<2x16x32xf32, #tpu.memory_space<vmem>>, vector<1x16x32xf32>
    %7 = vector.shape_cast %6 : vector<1x16x32xf32> to vector<16x32xf32>
    %8 = vector.broadcast %4 : i32 to vector<16x1xi32>
    %9 = arith.cmpi slt, %1, %8 : vector<16x1xi32>
    %cst = arith.constant 0xFF800000 : f32
    %10 = vector.shape_cast %9 : vector<16x1xi1> to vector<16x1xi1>
    %11 = vector.broadcast %10 : vector<16x1xi1> to vector<16x32xi1>
    %12 = vector.broadcast %cst : f32 to vector<16x32xf32>
    %13 = arith.select %11, %7, %12 : vector<16x32xi1>, vector<16x32xf32>
    %cst_2 = arith.constant dense<0xFF800000> : vector<32xf32>
    %14 = vector.multi_reduction <maximumf>, %13, %cst_2 [0] : vector<16x32xf32> to vector<32xf32>
    %15 = vector.shape_cast %14 : vector<32xf32> to vector<1x32xf32>
    %c0_i32_3 = arith.constant 0 : i32
    %16 = arith.cmpi sgt, %5, %c0_i32_3 : i32
    %cst_4 = arith.constant 0.000000e+00 : f32
    %17 = vector.broadcast %cst_4 : f32 to vector<1x32xf32>
    %18 = arith.select %16, %15, %17 : vector<1x32xf32>
    %c0_5 = arith.constant 0 : index
    %c0_6 = arith.constant 0 : index
    %c0_7 = arith.constant 0 : index
    %19 = vector.load %arg4[%c0_5, %c0_6, %c0_7] : memref<2x4x32xf32, #tpu.memory_space<vmem>>, vector<1x1x32xf32>
    %20 = vector.shape_cast %19 : vector<1x1x32xf32> to vector<1x32xf32>
    %21 = vector.shape_cast %18 : vector<1x32xf32> to vector<1x1x32xf32>
    tpu.vector_store %arg4[%c0_5, %c0_6, %c0_7], %21 {strides = array<i32>} : memref<2x4x32xf32, #tpu.memory_space<vmem>>, vector<1x1x32xf32>,
    %22 = vector.broadcast %15 : vector<1x32xf32> to vector<16x32xf32>
    %23 = arith.cmpf oeq, %13, %22 : vector<16x32xf32>
    %c16_i32 = arith.constant 16 : i32
    %24 = vector.shape_cast %1 : vector<16x1xi32> to vector<16x1xi32>
    %25 = vector.broadcast %24 : vector<16x1xi32> to vector<16x32xi32>
    %26 = vector.broadcast %c16_i32 : i32 to vector<16x32xi32>
    %27 = arith.select %23, %25, %26 : vector<16x32xi1>, vector<16x32xi32>
    %cst_8 = arith.constant dense<2147483647> : vector<32xi32>
    %28 = vector.multi_reduction <minsi>, %27, %cst_8 [0] : vector<16x32xi32> to vector<32xi32>
    %29 = vector.shape_cast %28 : vector<32xi32> to vector<1x32xi32>
    %30 = vector.broadcast %1 : vector<16x1xi32> to vector<16x32xi32>
    %31 = vector.broadcast %29 : vector<1x32xi32> to vector<16x32xi32>
    %32 = arith.cmpi eq, %30, %31 : vector<16x32xi32>
    %cst_9 = arith.constant 0xFF800000 : f32
    %33 = vector.broadcast %cst_9 : f32 to vector<16x32xf32>
    %34 = arith.select %32, %33, %13 : vector<16x32xi1>, vector<16x32xf32>
    %cst_10 = arith.constant dense<0xFF800000> : vector<32xf32>
    %35 = vector.multi_reduction <maximumf>, %34, %cst_10 [0] : vector<16x32xf32> to vector<32xf32>
    %36 = vector.shape_cast %35 : vector<32xf32> to vector<1x32xf32>
    %c1_i32 = arith.constant 1 : i32
    %37 = arith.cmpi sgt, %5, %c1_i32 : i32
    %cst_11 = arith.constant 0.000000e+00 : f32
    %38 = vector.broadcast %cst_11 : f32 to vector<1x32xf32>
    %39 = arith.select %37, %36, %38 : vector<1x32xf32>
    %c0_12 = arith.constant 0 : index
    %c1 = arith.constant 1 : index
    %c0_13 = arith.constant 0 : index
    %40 = vector.load %arg4[%c0_12, %c1, %c0_13] : memref<2x4x32xf32, #tpu.memory_space<vmem>>, vector<1x1x32xf32>
    %41 = vector.shape_cast %40 : vector<1x1x32xf32> to vector<1x32xf32>
    %42 = vector.shape_cast %39 : vector<1x32xf32> to vector<1x1x32xf32>
    tpu.vector_store %arg4[%c0_12, %c1, %c0_13], %42 {strides = array<i32>} : memref<2x4x32xf32, #tpu.memory_space<vmem>>, vector<1x1x32xf32>,
    %43 = vector.broadcast %36 : vector<1x32xf32> to vector<16x32xf32>
    %44 = arith.cmpf oeq, %34, %43 : vector<16x32xf32>
    %c16_i32_14 = arith.constant 16 : i32
    %45 = vector.shape_cast %1 : vector<16x1xi32> to vector<16x1xi32>
    %46 = vector.broadcast %45 : vector<16x1xi32> to vector<16x32xi32>
    %47 = vector.broadcast %c16_i32_14 : i32 to vector<16x32xi32>
    %48 = arith.select %44, %46, %47 : vector<16x32xi1>, vector<16x32xi32>
    %cst_15 = arith.constant dense<2147483647> : vector<32xi32>
    %49 = vector.multi_reduction <minsi>, %48, %cst_15 [0] : vector<16x32xi32> to vector<32xi32>
    %50 = vector.shape_cast %49 : vector<32xi32> to vector<1x32xi32>
    %51 = vector.broadcast %1 : vector<16x1xi32> to vector<16x32xi32>
    %52 = vector.broadcast %50 : vector<1x32xi32> to vector<16x32xi32>
    %53 = arith.cmpi eq, %51, %52 : vector<16x32xi32>
    %cst_16 = arith.constant 0xFF800000 : f32
    %54 = vector.broadcast %cst_16 : f32 to vector<16x32xf32>
    %55 = arith.select %53, %54, %34 : vector<16x32xi1>, vector<16x32xf32>
    %cst_17 = arith.constant dense<0xFF800000> : vector<32xf32>
    %56 = vector.multi_reduction <maximumf>, %55, %cst_17 [0] : vector<16x32xf32> to vector<32xf32>
    %57 = vector.shape_cast %56 : vector<32xf32> to vector<1x32xf32>
    %c2_i32_18 = arith.constant 2 : i32
    %58 = arith.cmpi sgt, %5, %c2_i32_18 : i32
    %cst_19 = arith.constant 0.000000e+00 : f32
    %59 = vector.broadcast %cst_19 : f32 to vector<1x32xf32>
    %60 = arith.select %58, %57, %59 : vector<1x32xf32>
    %c0_20 = arith.constant 0 : index
    %c2 = arith.constant 2 : index
    %c0_21 = arith.constant 0 : index
    %61 = vector.load %arg4[%c0_20, %c2, %c0_21] : memref<2x4x32xf32, #tpu.memory_space<vmem>>, vector<1x1x32xf32>
    %62 = vector.shape_cast %61 : vector<1x1x32xf32> to vector<1x32xf32>
    %63 = vector.shape_cast %60 : vector<1x32xf32> to vector<1x1x32xf32>
    tpu.vector_store %arg4[%c0_20, %c2, %c0_21], %63 {strides = array<i32>} : memref<2x4x32xf32, #tpu.memory_space<vmem>>, vector<1x1x32xf32>,
    %64 = vector.broadcast %57 : vector<1x32xf32> to vector<16x32xf32>
    %65 = arith.cmpf oeq, %55, %64 : vector<16x32xf32>
    %c16_i32_22 = arith.constant 16 : i32
    %66 = vector.shape_cast %1 : vector<16x1xi32> to vector<16x1xi32>
    %67 = vector.broadcast %66 : vector<16x1xi32> to vector<16x32xi32>
    %68 = vector.broadcast %c16_i32_22 : i32 to vector<16x32xi32>
    %69 = arith.select %65, %67, %68 : vector<16x32xi1>, vector<16x32xi32>
    %cst_23 = arith.constant dense<2147483647> : vector<32xi32>
    %70 = vector.multi_reduction <minsi>, %69, %cst_23 [0] : vector<16x32xi32> to vector<32xi32>
    %71 = vector.shape_cast %70 : vector<32xi32> to vector<1x32xi32>
    %72 = vector.broadcast %1 : vector<16x1xi32> to vector<16x32xi32>
    %73 = vector.broadcast %71 : vector<1x32xi32> to vector<16x32xi32>
    %74 = arith.cmpi eq, %72, %73 : vector<16x32xi32>
    %cst_24 = arith.constant 0xFF800000 : f32
    %75 = vector.broadcast %cst_24 : f32 to vector<16x32xf32>
    %76 = arith.select %74, %75, %55 : vector<16x32xi1>, vector<16x32xf32>
    %cst_25 = arith.constant dense<0xFF800000> : vector<32xf32>
    %77 = vector.multi_reduction <maximumf>, %76, %cst_25 [0] : vector<16x32xf32> to vector<32xf32>
    %78 = vector.shape_cast %77 : vector<32xf32> to vector<1x32xf32>
    %c3_i32 = arith.constant 3 : i32
    %79 = arith.cmpi sgt, %5, %c3_i32 : i32
    %cst_26 = arith.constant 0.000000e+00 : f32
    %80 = vector.broadcast %cst_26 : f32 to vector<1x32xf32>
    %81 = arith.select %79, %78, %80 : vector<1x32xf32>
    %c0_27 = arith.constant 0 : index
    %c3 = arith.constant 3 : index
    %c0_28 = arith.constant 0 : index
    %82 = vector.load %arg4[%c0_27, %c3, %c0_28] : memref<2x4x32xf32, #tpu.memory_space<vmem>>, vector<1x1x32xf32>
    %83 = vector.shape_cast %82 : vector<1x1x32xf32> to vector<1x32xf32>
    %84 = vector.shape_cast %81 : vector<1x32xf32> to vector<1x1x32xf32>
    tpu.vector_store %arg4[%c0_27, %c3, %c0_28], %84 {strides = array<i32>} : memref<2x4x32xf32, #tpu.memory_space<vmem>>, vector<1x1x32xf32>,
    %c1_i32_29 = arith.constant 1 : i32
    %85 = arith.addi %0, %c1_i32_29 : i32
    %86 = arith.index_cast %85 : i32 to index
    %87 = memref.load %arg2[%86] : memref<2xi32, #tpu.memory_space<smem>>
    %c4_i32_30 = arith.constant 4 : i32
    %88 = arith.minsi %87, %c4_i32_30 : i32
    %c1_31 = arith.constant 1 : index
    %c0_32 = arith.constant 0 : index
    %c0_33 = arith.constant 0 : index
    %89 = vector.load %arg3[%c1_31, %c0_32, %c0_33] : memref<2x16x32xf32, #tpu.memory_space<vmem>>, vector<1x16x32xf32>
    %90 = vector.shape_cast %89 : vector<1x16x32xf32> to vector<16x32xf32>
    %91 = vector.broadcast %87 : i32 to vector<16x1xi32>
    %92 = arith.cmpi slt, %1, %91 : vector<16x1xi32>
    %cst_34 = arith.constant 0xFF800000 : f32
    %93 = vector.shape_cast %92 : vector<16x1xi1> to vector<16x1xi1>
    %94 = vector.broadcast %93 : vector<16x1xi1> to vector<16x32xi1>
    %95 = vector.broadcast %cst_34 : f32 to vector<16x32xf32>
    %96 = arith.select %94, %90, %95 : vector<16x32xi1>, vector<16x32xf32>
    %cst_35 = arith.constant dense<0xFF800000> : vector<32xf32>
    %97 = vector.multi_reduction <maximumf>, %96, %cst_35 [0] : vector<16x32xf32> to vector<32xf32>
    %98 = vector.shape_cast %97 : vector<32xf32> to vector<1x32xf32>
    %c0_i32_36 = arith.constant 0 : i32
    %99 = arith.cmpi sgt, %88, %c0_i32_36 : i32
    %cst_37 = arith.constant 0.000000e+00 : f32
    %100 = vector.broadcast %cst_37 : f32 to vector<1x32xf32>
    %101 = arith.select %99, %98, %100 : vector<1x32xf32>
    %c1_38 = arith.constant 1 : index
    %c0_39 = arith.constant 0 : index
    %c0_40 = arith.constant 0 : index
    %102 = vector.load %arg4[%c1_38, %c0_39, %c0_40] : memref<2x4x32xf32, #tpu.memory_space<vmem>>, vector<1x1x32xf32>
    %103 = vector.shape_cast %102 : vector<1x1x32xf32> to vector<1x32xf32>
    %104 = vector.shape_cast %101 : vector<1x32xf32> to vector<1x1x32xf32>
    tpu.vector_store %arg4[%c1_38, %c0_39, %c0_40], %104 {strides = array<i32>} : memref<2x4x32xf32, #tpu.memory_space<vmem>>, vector<1x1x32xf32>,
    %105 = vector.broadcast %98 : vector<1x32xf32> to vector<16x32xf32>
    %106 = arith.cmpf oeq, %96, %105 : vector<16x32xf32>
    %c16_i32_41 = arith.constant 16 : i32
    %107 = vector.shape_cast %1 : vector<16x1xi32> to vector<16x1xi32>
    %108 = vector.broadcast %107 : vector<16x1xi32> to vector<16x32xi32>
    %109 = vector.broadcast %c16_i32_41 : i32 to vector<16x32xi32>
    %110 = arith.select %106, %108, %109 : vector<16x32xi1>, vector<16x32xi32>
    %cst_42 = arith.constant dense<2147483647> : vector<32xi32>
    %111 = vector.multi_reduction <minsi>, %110, %cst_42 [0] : vector<16x32xi32> to vector<32xi32>
    %112 = vector.shape_cast %111 : vector<32xi32> to vector<1x32xi32>
    %113 = vector.broadcast %1 : vector<16x1xi32> to vector<16x32xi32>
    %114 = vector.broadcast %112 : vector<1x32xi32> to vector<16x32xi32>
    %115 = arith.cmpi eq, %113, %114 : vector<16x32xi32>
    %cst_43 = arith.constant 0xFF800000 : f32
    %116 = vector.broadcast %cst_43 : f32 to vector<16x32xf32>
    %117 = arith.select %115, %116, %96 : vector<16x32xi1>, vector<16x32xf32>
    %cst_44 = arith.constant dense<0xFF800000> : vector<32xf32>
    %118 = vector.multi_reduction <maximumf>, %117, %cst_44 [0] : vector<16x32xf32> to vector<32xf32>
    %119 = vector.shape_cast %118 : vector<32xf32> to vector<1x32xf32>
    %c1_i32_45 = arith.constant 1 : i32
    %120 = arith.cmpi sgt, %88, %c1_i32_45 : i32
    %cst_46 = arith.constant 0.000000e+00 : f32
    %121 = vector.broadcast %cst_46 : f32 to vector<1x32xf32>
    %122 = arith.select %120, %119, %121 : vector<1x32xf32>
    %c1_47 = arith.constant 1 : index
    %c1_48 = arith.constant 1 : index
    %c0_49 = arith.constant 0 : index
    %123 = vector.load %arg4[%c1_47, %c1_48, %c0_49] : memref<2x4x32xf32, #tpu.memory_space<vmem>>, vector<1x1x32xf32>
    %124 = vector.shape_cast %123 : vector<1x1x32xf32> to vector<1x32xf32>
    %125 = vector.shape_cast %122 : vector<1x32xf32> to vector<1x1x32xf32>
    tpu.vector_store %arg4[%c1_47, %c1_48, %c0_49], %125 {strides = array<i32>} : memref<2x4x32xf32, #tpu.memory_space<vmem>>, vector<1x1x32xf32>,
    %126 = vector.broadcast %119 : vector<1x32xf32> to vector<16x32xf32>
    %127 = arith.cmpf oeq, %117, %126 : vector<16x32xf32>
    %c16_i32_50 = arith.constant 16 : i32
    %128 = vector.shape_cast %1 : vector<16x1xi32> to vector<16x1xi32>
    %129 = vector.broadcast %128 : vector<16x1xi32> to vector<16x32xi32>
    %130 = vector.broadcast %c16_i32_50 : i32 to vector<16x32xi32>
    %131 = arith.select %127, %129, %130 : vector<16x32xi1>, vector<16x32xi32>
    %cst_51 = arith.constant dense<2147483647> : vector<32xi32>
    %132 = vector.multi_reduction <minsi>, %131, %cst_51 [0] : vector<16x32xi32> to vector<32xi32>
    %133 = vector.shape_cast %132 : vector<32xi32> to vector<1x32xi32>
    %134 = vector.broadcast %1 : vector<16x1xi32> to vector<16x32xi32>
    %135 = vector.broadcast %133 : vector<1x32xi32> to vector<16x32xi32>
    %136 = arith.cmpi eq, %134, %135 : vector<16x32xi32>
    %cst_52 = arith.constant 0xFF800000 : f32
    %137 = vector.broadcast %cst_52 : f32 to vector<16x32xf32>
    %138 = arith.select %136, %137, %117 : vector<16x32xi1>, vector<16x32xf32>
    %cst_53 = arith.constant dense<0xFF800000> : vector<32xf32>
    %139 = vector.multi_reduction <maximumf>, %138, %cst_53 [0] : vector<16x32xf32> to vector<32xf32>
    %140 = vector.shape_cast %139 : vector<32xf32> to vector<1x32xf32>
    %c2_i32_54 = arith.constant 2 : i32
    %141 = arith.cmpi sgt, %88, %c2_i32_54 : i32
    %cst_55 = arith.constant 0.000000e+00 : f32
    %142 = vector.broadcast %cst_55 : f32 to vector<1x32xf32>
    %143 = arith.select %141, %140, %142 : vector<1x32xf32>
    %c1_56 = arith.constant 1 : index
    %c2_57 = arith.constant 2 : index
    %c0_58 = arith.constant 0 : index
    %144 = vector.load %arg4[%c1_56, %c2_57, %c0_58] : memref<2x4x32xf32, #tpu.memory_space<vmem>>, vector<1x1x32xf32>
    %145 = vector.shape_cast %144 : vector<1x1x32xf32> to vector<1x32xf32>
    %146 = vector.shape_cast %143 : vector<1x32xf32> to vector<1x1x32xf32>
    tpu.vector_store %arg4[%c1_56, %c2_57, %c0_58], %146 {strides = array<i32>} : memref<2x4x32xf32, #tpu.memory_space<vmem>>, vector<1x1x32xf32>,
    %147 = vector.broadcast %140 : vector<1x32xf32> to vector<16x32xf32>
    %148 = arith.cmpf oeq, %138, %147 : vector<16x32xf32>
    %c16_i32_59 = arith.constant 16 : i32
    %149 = vector.shape_cast %1 : vector<16x1xi32> to vector<16x1xi32>
    %150 = vector.broadcast %149 : vector<16x1xi32> to vector<16x32xi32>
    %151 = vector.broadcast %c16_i32_59 : i32 to vector<16x32xi32>
    %152 = arith.select %148, %150, %151 : vector<16x32xi1>, vector<16x32xi32>
    %cst_60 = arith.constant dense<2147483647> : vector<32xi32>
    %153 = vector.multi_reduction <minsi>, %152, %cst_60 [0] : vector<16x32xi32> to vector<32xi32>
    %154 = vector.shape_cast %153 : vector<32xi32> to vector<1x32xi32>
    %155 = vector.broadcast %1 : vector<16x1xi32> to vector<16x32xi32>
    %156 = vector.broadcast %154 : vector<1x32xi32> to vector<16x32xi32>
    %157 = arith.cmpi eq, %155, %156 : vector<16x32xi32>
    %cst_61 = arith.constant 0xFF800000 : f32
    %158 = vector.broadcast %cst_61 : f32 to vector<16x32xf32>
    %159 = arith.select %157, %158, %138 : vector<16x32xi1>, vector<16x32xf32>
    %cst_62 = arith.constant dense<0xFF800000> : vector<32xf32>
    %160 = vector.multi_reduction <maximumf>, %159, %cst_62 [0] : vector<16x32xf32> to vector<32xf32>
    %161 = vector.shape_cast %160 : vector<32xf32> to vector<1x32xf32>
    %c3_i32_63 = arith.constant 3 : i32
    %162 = arith.cmpi sgt, %88, %c3_i32_63 : i32
    %cst_64 = arith.constant 0.000000e+00 : f32
    %163 = vector.broadcast %cst_64 : f32 to vector<1x32xf32>
    %164 = arith.select %162, %161, %163 : vector<1x32xf32>
    %c1_65 = arith.constant 1 : index
    %c3_66 = arith.constant 3 : index
    %c0_67 = arith.constant 0 : index
    %165 = vector.load %arg4[%c1_65, %c3_66, %c0_67] : memref<2x4x32xf32, #tpu.memory_space<vmem>>, vector<1x1x32xf32>
    %166 = vector.shape_cast %165 : vector<1x1x32xf32> to vector<1x32xf32>
    %167 = vector.shape_cast %164 : vector<1x32xf32> to vector<1x1x32xf32>
    tpu.vector_store %arg4[%c1_65, %c3_66, %c0_67], %167 {strides = array<i32>} : memref<2x4x32xf32, #tpu.memory_space<vmem>>, vector<1x1x32xf32>,
    return
  }
  func.func @transform_0(%arg0: i32, %arg1: i32, %arg2: memref<2xi32, #tpu.memory_space<smem>>) -> (i32, i32, i32) {
    %c0_i32 = arith.constant 0 : i32
    %c0_i32_0 = arith.constant 0 : i32
    return %arg0, %c0_i32, %arg1 : i32, i32, i32
  }
  func.func @transform_1(%arg0: i32, %arg1: i32, %arg2: memref<2xi32, #tpu.memory_space<smem>>) -> (i32, i32, i32) {
    %c0_i32 = arith.constant 0 : i32
    %c0_i32_0 = arith.constant 0 : i32
    return %arg0, %c0_i32, %arg1 : i32, i32, i32
  }
}

</mosaic_0001>

<llo_original>
// kernel: tpu_custom_call.1
$region0: #{tpu_custom_call.1}
  #allocation0 [shape = 'u32[]', space=smem, size = 0x4, offset = 0x4, fixed_abs, tag = 'smem constant byte address 0x4 - core index']
  #allocation1 [shape = 'u32[144,128]{1,0:T(1,128)}', space=vmem, size = 0x12000, scoped, tag = 'internal scratch']
  #allocation2 [shape = 's32[1]{0}', space=sflag, size = 0x4, scoped, tag = 'scoped memory for tpu_custom_call.1']
  #allocation3 [shape = 'u8[512]{0}', space=smem, size = 0x200, scoped, tag = 'prefetched SMEM operand 0']
  %s0 = inlined_call_operand.hbm [shape: s32[2], index: 0, kind: input, shape index: {}]
  %s1 = inlined_call_operand.hbm [shape: f32[2,16,32], index: 1, kind: input, shape index: {}]
  %s2 = inlined_call_operand.hbm [shape: f32[2,4,32], index: 2, kind: output, shape index: {}]
  %s3 = sld [smem:[#allocation0]]
  $region18: #{tpu_custom_call.1} parent=0
    _
  %s5 = ssub.s32 1, %s3
  %s6 = scalar_select 0, %s5, %s3
  %8 = dma.hbm_to_smem %s0, 16, [#allocation3], [#allocation2]
  %9 = dma.done [#allocation2], 16
  %10 = sfence
  $region1: #{tpu_custom_call.1} parent=0
    #allocation4 [shape = 'u8[16384]{0}', space=vmem, size = 0x4000, scoped, tag = 'input window, operand 1, single buffered']
    #allocation5 [shape = 's32[1]{0}', space=sflag, size = 0x4, scoped, tag = 'scoped memory for tpu_custom_call.1']
    #allocation6 [shape = 's32[1]{0}', space=sflag, size = 0x4, scoped, tag = 'scoped memory for tpu_custom_call.1']
    #allocation7 [shape = 'u8[4096]{0}', space=vmem, size = 0x1000, scoped, tag = 'output window, operand 0, single buffered']
    %11 = vsyncpa [#allocation5], 0
    %12 = vsyncpa [#allocation6], 0
    // Predicated region
    $region2: #{tpu_custom_call.1} parent=1 // pred_check
      _
    $region3: #{tpu_custom_call.1} parent=1 // pred_check_branch
      %14 = sbr.rel (0) target = $region5
    $region4: #{tpu_custom_call.1} parent=1 // pred_region
      %s16 = ssub.s32 512, 512
      %17 = vsyncadd [#allocation5], %s16
      %s18 = sshll.u32 [#allocation4], 4
      %s19 = int_to_ptr.vmem [resolvable:$true] %s18
      %24 = dma.hbm_to_vmem [thread:$0]  %s1, 512, %s19, [#allocation5], 128, 128, 8
    $region5: #{tpu_custom_call.1} parent=1 // pred_fallthru
      _
    // Predicated region
    $region6: #{tpu_custom_call.1} parent=1 // pred_check
      _
    $region7: #{tpu_custom_call.1} parent=1 // pred_check_branch
      %26 = sbr.rel (0) target = $region9
    $region8: #{tpu_custom_call.1} parent=1 // pred_region
      %27 = dma.done [#allocation5], 512
    $region9: #{tpu_custom_call.1} parent=1 // pred_fallthru
      _
    %s28 = smul.u32 0, 2
    %v29 = vlaneseq
    %v30 = vshrl.u32 %v29, 7
    %v31 = vadd.s32 %v30, 8
    %s32 = sld [smem:[#allocation3 + %s28]]
    %p33 = scmp.lt.s32.totalorder %s32, 4
    %s34 = scalar_select %p33, %s32, 4
    %v35 = vld [vmem:[#allocation4] sm:$0xff]
    %v36 = vld [vmem:[#allocation4 + $0x8] sm:$0xff]
    %v37 = vstv %s32
    %vm38 = vcmp.lt.s32.totalorder %v30, %v37
    %vm39 = vcmp.lt.s32.totalorder %v31, %v37
    %v40 = vsel %vm38, 1, 0
    %v41 = vsel %vm39, 1, 0
    %vm42 = vcmp.eq.s32.totalorder %v40, 1
    %vm43 = vcmp.eq.s32.totalorder %v41, 1
    %v44 = vsel %vm42, %v35, -inf
    %v45 = vsel %vm43, %v36, -inf
    %vm46 = vcmask 261120
    %v47 = vsel %vm46, %v44, -inf
    %v48 = vsel %vm46, %v45, -inf
    %v49 = vmax.f32 %v47, %v48
    %v50 = vrot.slane %v49, 4
    %v51 = vmax.f32 %v49, %v50
    %v52 = vrot.slane %v51, 2
    %v53 = vmax.f32 %v51, %v52
    %v54 = vrot.slane %v53, 1
    %v55 = vmax.f32 %v53, %v54
    %p56 = scmp.gt.s32.totalorder %s34, 0
    %s57 = scalar_select %p56, 1, 0
    %v58 = vstv %s57
    %vm59 = vcmp.eq.s32.totalorder %v58, 1
    %v60 = vsel %vm59, %v55, 0.0
    %vm61 = vcmask 253952
    %62 = vst.msk [vmem:[#allocation7] sm:$0x1] %vm61, %v60
    %vm63 = vcmp.eq.f32.partialorder %v44, %v55
    %vm64 = vcmp.eq.f32.partialorder %v45, %v55
    %v65 = vsel %vm63, %v30, 16
    %v66 = vsel %vm64, %v31, 16
    %v67 = vsel %vm46, %v65, 2147483647
    %v68 = vsel %vm46, %v66, 2147483647
    %vm69 = vcmp.lt.s32.totalorder %v67, %v68
    %v70 = vsel %vm69, %v67, %v68
    %v71 = vrot.slane %v70, 4
    %vm72 = vcmp.lt.s32.totalorder %v70, %v71
    %v73 = vsel %vm72, %v70, %v71
    %v74 = vrot.slane %v73, 2
    %vm75 = vcmp.lt.s32.totalorder %v73, %v74
    %v76 = vsel %vm75, %v73, %v74
    %v77 = vrot.slane %v76, 1
    %vm78 = vcmp.lt.s32.totalorder %v76, %v77
    %v79 = vsel %vm78, %v76, %v77
    %vm80 = vcmp.eq.s32.totalorder %v30, %v79
    %vm81 = vcmp.eq.s32.totalorder %v31, %v79
    %v82 = vsel %vm80, -inf, %v44
    %v83 = vsel %vm81, -inf, %v45
    %v84 = vsel %vm46, %v82, -inf
    %v85 = vsel %vm46, %v83, -inf
    %v86 = vmax.f32 %v84, %v85
    %v87 = vrot.slane %v86, 4
    %v88 = vmax.f32 %v86, %v87
    %v89 = vrot.slane %v88, 2
    %v90 = vmax.f32 %v88, %v89
    %v91 = vrot.slane %v90, 1
    %v92 = vmax.f32 %v90, %v91
    %p93 = scmp.gt.s32.totalorder %s34, 1
    %s94 = scalar_select %p93, 1, 0
    %v95 = vstv %s94
    %vm96 = vcmp.eq.s32.totalorder %v95, 1
    %v97 = vsel %vm96, %v92, 0.0
    %98 = vst.msk [vmem:[#allocation7 + $0x1] sm:$0x1] %vm61, %v97
    %vm99 = vcmp.eq.f32.partialorder %v82, %v92
    %vm100 = vcmp.eq.f32.partialorder %v83, %v92
    %v101 = vsel %vm99, %v30, 16
    %v102 = vsel %vm100, %v31, 16
    %v103 = vsel %vm46, %v101, 2147483647
    %v104 = vsel %vm46, %v102, 2147483647
    %vm105 = vcmp.lt.s32.totalorder %v103, %v104
    %v106 = vsel %vm105, %v103, %v104
    %v107 = vrot.slane %v106, 4
    %vm108 = vcmp.lt.s32.totalorder %v106, %v107
    %v109 = vsel %vm108, %v106, %v107
    %v110 = vrot.slane %v109, 2
    %vm111 = vcmp.lt.s32.totalorder %v109, %v110
    %v112 = vsel %vm111, %v109, %v110
    %v113 = vrot.slane %v112, 1
    %vm114 = vcmp.lt.s32.totalorder %v112, %v113
    %v115 = vsel %vm114, %v112, %v113
    %vm116 = vcmp.eq.s32.totalorder %v30, %v115
    %vm117 = vcmp.eq.s32.totalorder %v31, %v115
    %v118 = vsel %vm116, -inf, %v82
    %v119 = vsel %vm117, -inf, %v83
    %v120 = vsel %vm46, %v118, -inf
    %v121 = vsel %vm46, %v119, -inf
    %v122 = vmax.f32 %v120, %v121
    %v123 = vrot.slane %v122, 4
    %v124 = vmax.f32 %v122, %v123
    %v125 = vrot.slane %v124, 2
    %v126 = vmax.f32 %v124, %v125
    %v127 = vrot.slane %v126, 1
    %v128 = vmax.f32 %v126, %v127
    %p129 = scmp.gt.s32.totalorder %s34, 2
    %s130 = scalar_select %p129, 1, 0
    %v131 = vstv %s130
    %vm132 = vcmp.eq.s32.totalorder %v131, 1
    %v133 = vsel %vm132, %v128, 0.0
    %134 = vst.msk [vmem:[#allocation7 + $0x2] sm:$0x1] %vm61, %v133
    %vm135 = vcmp.eq.f32.partialorder %v118, %v128
    %vm136 = vcmp.eq.f32.partialorder %v119, %v128
    %v137 = vsel %vm135, %v30, 16
    %v138 = vsel %vm136, %v31, 16
    %v139 = vsel %vm46, %v137, 2147483647
    %v140 = vsel %vm46, %v138, 2147483647
    %vm141 = vcmp.lt.s32.totalorder %v139, %v140
    %v142 = vsel %vm141, %v139, %v140
    %v143 = vrot.slane %v142, 4
    %vm144 = vcmp.lt.s32.totalorder %v142, %v143
    %v145 = vsel %vm144, %v142, %v143
    %v146 = vrot.slane %v145, 2
    %vm147 = vcmp.lt.s32.totalorder %v145, %v146
    %v148 = vsel %vm147, %v145, %v146
    %v149 = vrot.slane %v148, 1
    %vm150 = vcmp.lt.s32.totalorder %v148, %v149
    %v151 = vsel %vm150, %v148, %v149
    %vm152 = vcmp.eq.s32.totalorder %v30, %v151
    %vm153 = vcmp.eq.s32.totalorder %v31, %v151
    %v154 = vsel %vm152, -inf, %v118
    %v155 = vsel %vm153, -inf, %v119
    %v156 = vsel %vm46, %v154, -inf
    %v157 = vsel %vm46, %v155, -inf
    %v158 = vmax.f32 %v156, %v157
    %v159 = vrot.slane %v158, 4
    %v160 = vmax.f32 %v158, %v159
    %v161 = vrot.slane %v160, 2
    %v162 = vmax.f32 %v160, %v161
    %v163 = vrot.slane %v162, 1
    %v164 = vmax.f32 %v162, %v163
    %p165 = scmp.gt.s32.totalorder %s34, 3
    %s166 = scalar_select %p165, 1, 0
    %v167 = vstv %s166
    %vm168 = vcmp.eq.s32.totalorder %v167, 1
    %v169 = vsel %vm168, %v164, 0.0
    %170 = vst.msk [vmem:[#allocation7 + $0x3] sm:$0x1] %vm61, %v169
    %s171 = sadd.s32 %s28, 1
    %s172 = sld [smem:[#allocation3 + %s171]]
    %p173 = scmp.lt.s32.totalorder %s172, 4
    %s174 = scalar_select %p173, %s172, 4
    %s175 = scalar_lea.vmem [#allocation4], 16
    %v176 = vld [vmem:[%s175] sm:$0xff]
    %v177 = vld [vmem:[%s175 + $0x8] sm:$0xff]
    %v178 = vstv %s172
    %vm179 = vcmp.lt.s32.totalorder %v30, %v178
    %vm180 = vcmp.lt.s32.totalorder %v31, %v178
    %v181 = vsel %vm179, 1, 0
    %v182 = vsel %vm180, 1, 0
    %vm183 = vcmp.eq.s32.totalorder %v181, 1
    %vm184 = vcmp.eq.s32.totalorder %v182, 1
    %v185 = vsel %vm183, %v176, -inf
    %v186 = vsel %vm184, %v177, -inf
    %v187 = vsel %vm46, %v185, -inf
    %v188 = vsel %vm46, %v186, -inf
    %v189 = vmax.f32 %v187, %v188
    %v190 = vrot.slane %v189, 4
    %v191 = vmax.f32 %v189, %v190
    %v192 = vrot.slane %v191, 2
    %v193 = vmax.f32 %v191, %v192
    %v194 = vrot.slane %v193, 1
    %v195 = vmax.f32 %v193, %v194
    %p196 = scmp.gt.s32.totalorder %s174, 0
    %s197 = scalar_select %p196, 1, 0
    %v198 = vstv %s197
    %vm199 = vcmp.eq.s32.totalorder %v198, 1
    %v200 = vsel %vm199, %v195, 0.0
    %s201 = scalar_lea.vmem [#allocation7], 4
    %202 = vst.msk [vmem:[%s201] sm:$0x1] %vm61, %v200
    %vm203 = vcmp.eq.f32.partialorder %v185, %v195
    %vm204 = vcmp.eq.f32.partialorder %v186, %v195
    %v205 = vsel %vm203, %v30, 16
    %v206 = vsel %vm204, %v31, 16
    %v207 = vsel %vm46, %v205, 2147483647
    %v208 = vsel %vm46, %v206, 2147483647
    %vm209 = vcmp.lt.s32.totalorder %v207, %v208
    %v210 = vsel %vm209, %v207, %v208
    %v211 = vrot.slane %v210, 4
    %vm212 = vcmp.lt.s32.totalorder %v210, %v211
    %v213 = vsel %vm212, %v210, %v211
    %v214 = vrot.slane %v213, 2
    %vm215 = vcmp.lt.s32.totalorder %v213, %v214
    %v216 = vsel %vm215, %v213, %v214
    %v217 = vrot.slane %v216, 1
    %vm218 = vcmp.lt.s32.totalorder %v216, %v217
    %v219 = vsel %vm218, %v216, %v217
    %vm220 = vcmp.eq.s32.totalorder %v30, %v219
    %vm221 = vcmp.eq.s32.totalorder %v31, %v219
    %v222 = vsel %vm220, -inf, %v185
    %v223 = vsel %vm221, -inf, %v186
    %v224 = vsel %vm46, %v222, -inf
    %v225 = vsel %vm46, %v223, -inf
    %v226 = vmax.f32 %v224, %v225
    %v227 = vrot.slane %v226, 4
    %v228 = vmax.f32 %v226, %v227
    %v229 = vrot.slane %v228, 2
    %v230 = vmax.f32 %v228, %v229
    %v231 = vrot.slane %v230, 1
    %v232 = vmax.f32 %v230, %v231
    %p233 = scmp.gt.s32.totalorder %s174, 1
    %s234 = scalar_select %p233, 1, 0
    %v235 = vstv %s234
    %vm236 = vcmp.eq.s32.totalorder %v235, 1
    %v237 = vsel %vm236, %v232, 0.0
    %238 = vst.msk [vmem:[%s201 + $0x1] sm:$0x1] %vm61, %v237
    %vm239 = vcmp.eq.f32.partialorder %v222, %v232
    %vm240 = vcmp.eq.f32.partialorder %v223, %v232
    %v241 = vsel %vm239, %v30, 16
    %v242 = vsel %vm240, %v31, 16
    %v243 = vsel %vm46, %v241, 2147483647
    %v244 = vsel %vm46, %v242, 2147483647
    %vm245 = vcmp.lt.s32.totalorder %v243, %v244
    %v246 = vsel %vm245, %v243, %v244
    %v247 = vrot.slane %v246, 4
    %vm248 = vcmp.lt.s32.totalorder %v246, %v247
    %v249 = vsel %vm248, %v246, %v247
    %v250 = vrot.slane %v249, 2
    %vm251 = vcmp.lt.s32.totalorder %v249, %v250
    %v252 = vsel %vm251, %v249, %v250
    %v253 = vrot.slane %v252, 1
    %vm254 = vcmp.lt.s32.totalorder %v252, %v253
    %v255 = vsel %vm254, %v252, %v253
    %vm256 = vcmp.eq.s32.totalorder %v30, %v255
    %vm257 = vcmp.eq.s32.totalorder %v31, %v255
    %v258 = vsel %vm256, -inf, %v222
    %v259 = vsel %vm257, -inf, %v223
    %v260 = vsel %vm46, %v258, -inf
    %v261 = vsel %vm46, %v259, -inf
    %v262 = vmax.f32 %v260, %v261
    %v263 = vrot.slane %v262, 4
    %v264 = vmax.f32 %v262, %v263
    %v265 = vrot.slane %v264, 2
    %v266 = vmax.f32 %v264, %v265
    %v267 = vrot.slane %v266, 1
    %v268 = vmax.f32 %v266, %v267
    %p269 = scmp.gt.s32.totalorder %s174, 2
    %s270 = scalar_select %p269, 1, 0
    %v271 = vstv %s270
    %vm272 = vcmp.eq.s32.totalorder %v271, 1
    %v273 = vsel %vm272, %v268, 0.0
    %274 = vst.msk [vmem:[%s201 + $0x2] sm:$0x1] %vm61, %v273
    %vm275 = vcmp.eq.f32.partialorder %v258, %v268
    %vm276 = vcmp.eq.f32.partialorder %v259, %v268
    %v277 = vsel %vm275, %v30, 16
    %v278 = vsel %vm276, %v31, 16
    %v279 = vsel %vm46, %v277, 2147483647
    %v280 = vsel %vm46, %v278, 2147483647
    %vm281 = vcmp.lt.s32.totalorder %v279, %v280
    %v282 = vsel %vm281, %v279, %v280
    %v283 = vrot.slane %v282, 4
    %vm284 = vcmp.lt.s32.totalorder %v282, %v283
    %v285 = vsel %vm284, %v282, %v283
    %v286 = vrot.slane %v285, 2
    %vm287 = vcmp.lt.s32.totalorder %v285, %v286
    %v288 = vsel %vm287, %v285, %v286
    %v289 = vrot.slane %v288, 1
    %vm290 = vcmp.lt.s32.totalorder %v288, %v289
    %v291 = vsel %vm290, %v288, %v289
    %vm292 = vcmp.eq.s32.totalorder %v30, %v291
    %vm293 = vcmp.eq.s32.totalorder %v31, %v291
    %v294 = vsel %vm292, -inf, %v258
    %v295 = vsel %vm293, -inf, %v259
    %v296 = vsel %vm46, %v294, -inf
    %v297 = vsel %vm46, %v295, -inf
    %v298 = vmax.f32 %v296, %v297
    %v299 = vrot.slane %v298, 4
    %v300 = vmax.f32 %v298, %v299
    %v301 = vrot.slane %v300, 2
    %v302 = vmax.f32 %v300, %v301
    %v303 = vrot.slane %v302, 1
    %v304 = vmax.f32 %v302, %v303
    %p305 = scmp.gt.s32.totalorder %s174, 3
    %s306 = scalar_select %p305, 1, 0
    %v307 = vstv %s306
    %vm308 = vcmp.eq.s32.totalorder %v307, 1
    %v309 = vsel %vm308, %v304, 0.0
    %310 = vst.msk [vmem:[%s201 + $0x3] sm:$0x1] %vm61, %v309
    // Predicated region
    $region10: #{tpu_custom_call.1} parent=1 // pred_check
      _
    $region11: #{tpu_custom_call.1} parent=1 // pred_check_branch
      %312 = sbr.rel (0) target = $region13
    $region12: #{tpu_custom_call.1} parent=1 // pred_region
      %s314 = ssub.s32 128, 128
      %315 = vsyncadd [#allocation6], %s314
      %s316 = sshll.u32 [#allocation7], 4
      %s317 = int_to_ptr.vmem [resolvable:$true] %s316
      %322 = dma.vmem_to_hbm [thread:$0]  %s317, 128, %s2, [#allocation6], 64, 64, 4
    $region13: #{tpu_custom_call.1} parent=1 // pred_fallthru
      _
    // Predicated region
    $region14: #{tpu_custom_call.1} parent=1 // pred_check
      _
    $region15: #{tpu_custom_call.1} parent=1 // pred_check_branch
      %324 = sbr.rel (0) target = $region17
    $region16: #{tpu_custom_call.1} parent=1 // pred_region
      %325 = dma.done [#allocation6], 128
    $region17: #{tpu_custom_call.1} parent=1 // pred_fallthru
      _
    %326 = vsyncpa [#allocation5], 1
    %327 = vsyncpa [#allocation6], 1

</llo_original>
